<compile_context>
chip_gen: v7x
topology: tpu7x:2x2x1
jax: 0.10.0
libtpu: 0.0.40
codegen_flags: <defaults>
</compile_context>

<pallas_src>
import jax
import jax.numpy as jnp
from jax import lax
from jax.experimental import pallas as pl
from jax.experimental.pallas import tpu as pltpu


_MAX_TILE_N = 2048  # upper bound on atoms per grid step (x tile = 128 KiB bf16 at H=32)


# ----------------------------------------------------------------------------
# Pallas kernel: one tile of atoms -> per-atom energy (lane-dense).
# ----------------------------------------------------------------------------
def _mlp_energy_kernel(x_ref, scale_ref, w1t_ref, b1t_ref, w2_ref, b2_ref,
                       atomic_ref):
    """Shapes (per grid step):
      x_ref      [TILE_N, H]  bf16  atom rows on sublanes, features on lanes
      scale_ref  [1, TILE_N]  f32   per-atom scale, lane-dense
      w1t_ref    [H2, H]      bf16  layer-1 weight, pre-transposed (grid-invariant)
      b1t_ref    [H2, 1]      f32   layer-1 bias as a column
      w2_ref     [H2, 1]      f32   layer-2 weight as a column
      b2_ref     (1, 1) SMEM  f32   layer-2 bias (scalar path)
      atomic_ref [1, TILE_N]  f32   per-atom energy, lane-dense
    """
    # Layer 1 on the MXU in "NT" form:  h_t[j, n] = sum_k w1t[j, k] * x[n, k]
    # bf16 inputs, f32 accumulation; result is transposed so atoms sit on the
    # lane axis for the rest of the kernel.
    h_t = lax.dot_general(w1t_ref[...], x_ref[...], (((1,), (1,)), ((), ())),
                          preferred_element_type=jnp.float32)       # [H2, TILE_N]
    h_t = jnp.maximum(h_t + b1t_ref[...], 0.0)                      # VPU relu (f32)

    # Layer 2 has output width 1: VPU multiply + sublane (XLU) reduce instead
    # of a width-1 MXU matmul; the result is already lane-dense.
    e = jnp.sum(h_t * w2_ref[...], axis=0, keepdims=True)           # [1, TILE_N]
    atomic_ref[...] = (e + b2_ref[0, 0]) * scale_ref[...]


# ----------------------------------------------------------------------------
# Inner model: Sequence[Array] -> Sequence[Array]
# ----------------------------------------------------------------------------
def mlp_energy_model(inputs):
    """inputs  = [node_features [N, H], node_scale [N, 1]]
       returns [atomic_energy [N, 1], total_energy [1, 1]]
    """
    x, scale = inputs
    n, h = x.shape
    p = _PARAMS
    h2 = p["w1t"].shape[0]

    # Tile sizing (perf review):
    #  * whole problem small  -> one grid step (kernel is launch/latency bound);
    #  * whole problem large  -> up-to-2048-atom tiles; any ragged last tile is
    #    handled by Pallas masked boundary stores, so x is NOT padded/copied.
    n128 = ((n + 127) // 128) * 128
    tile_n = min(n128, _MAX_TILE_N)
    n_tiles = pl.cdiv(n, tile_n)
    # TODO(synk): on v7x, for mid-size N prefer an even n_tiles >= 2 so both
    # TensorCores get work on the "parallel" grid axis; also re-derive the tile
    # budget against v7x's 64 MiB VMEM if H grows to NequIP-realistic widths.

    # bf16 at the kernel boundary halves the dominant DMA term and uses the
    # MXU's native datapath; accumulation stays f32 inside the kernel.
    x_bf16 = x.astype(jnp.bfloat16)
    s_row = scale.reshape(1, n)           # free layout reshape -> lane-dense scale

    cost = pl.CostEstimate(
        flops=2 * n * h * h2 + 5 * n * h2 + 3 * n,
        transcendentals=0,
        bytes_accessed=(2 * n * h            # x (bf16)
                        + 2 * h * h2         # w1t (bf16)
                        + 4 * (2 * n + 2 * h2 + 1)),  # scale, out, b1, w2, b2 (f32)
    )

    atomic_row = pl.pallas_call(
        _mlp_energy_kernel,
        grid=(n_tiles,),
        in_specs=[
            pl.BlockSpec((tile_n, h), lambda i: (i, 0)),        # x: atom tiles (bf16)
            pl.BlockSpec((1, tile_n), lambda i: (0, i)),        # scale: lane-dense
            pl.BlockSpec((h2, h), lambda i: (0, 0)),            # w1t (grid-invariant)
            pl.BlockSpec((h2, 1), lambda i: (0, 0)),            # b1t
            pl.BlockSpec((h2, 1), lambda i: (0, 0)),            # w2
            pl.BlockSpec(memory_space=pltpu.MemorySpace.SMEM),  # b2 scalar
        ],
        out_specs=pl.BlockSpec((1, tile_n), lambda i: (0, i)),
        out_shape=jax.ShapeDtypeStruct((1, n), jnp.float32),
        compiler_params=pltpu.CompilerParams(
            dimension_semantics=("parallel",)),
        cost_estimate=cost,
    )(x_bf16, s_row, p["w1t"], p["b1t"], p["w2"], p["b2"])

    atomic = atomic_row.reshape(n, 1)     # free layout reshape back to [N, 1]
    # Total energy: trailing f32 sum over an [N] vector outside the kernel is
    # negligible and keeps the atom grid axis fully parallel (no accumulator).
    # TODO(synk): at millions of atoms, emit per-tile partial sums from the
    # kernel instead of re-reading `atomic` for the total.
    total = jnp.sum(atomic, dtype=jnp.float32).reshape(1, 1)
    return [atomic, total]


# ----------------------------------------------------------------------------
# DictInputOutputWrapper: dict -> list -> inner model -> list -> dict.
# ----------------------------------------------------------------------------
def _list_from_dict(keys, data):
    return [data[key] for key in keys]


def _list_to_dict(keys, args):
    return {key: arg for key, arg in zip(keys, args)}


class DictInputOutputWrapper:
    """JAX equivalent of nequip.nn.compile.DictInputOutputWrapper.

    torch.inference_mode() has no JAX analogue needed here (no autograd state).
    """

    def __init__(self, model, input_keys, output_keys):
        self.model = model
        self.input_keys = list(input_keys)
        self.output_keys = list(output_keys)

    def __call__(self, data):
        inputs = _list_from_dict(self.input_keys, data)
        outputs = self.model(inputs)
        return _list_to_dict(self.output_keys, outputs)


# ----------------------------------------------------------------------------
# Deterministic parameter construction (synthetic; no checkpoint loading).
# ----------------------------------------------------------------------------
_N_ATOMS = 256
_HIDDEN = 32
_HIDDEN2 = 64

_param_key = jax.random.PRNGKey(0)
_k_w1, _k_b1, _k_w2, _k_b2, _k_x, _k_s = jax.random.split(_param_key, 6)
_w1 = jax.random.normal(_k_w1, (_HIDDEN, _HIDDEN2), jnp.float32) / jnp.sqrt(_HIDDEN)
_b1 = jax.random.normal(_k_b1, (1, _HIDDEN2), jnp.float32) * 0.01
_w2 = jax.random.normal(_k_w2, (_HIDDEN2, 1), jnp.float32) / jnp.sqrt(_HIDDEN2)
_b2 = jax.random.normal(_k_b2, (1, 1), jnp.float32) * 0.01
_PARAMS = {
    # kernel-layout params (tiny one-time transposes/casts, done at build time)
    "w1t": _w1.T.astype(jnp.bfloat16),   # [H2, H] bf16 (MXU native)
    "b1t": _b1.T,                        # [H2, 1] f32
    "w2": _w2,                           # [H2, 1] f32
    "b2": _b2,                           # (1, 1)  f32 -> SMEM scalar
    # original layouts kept only for the plain-JAX reference check
    "w1": _w1, "b1": _b1,
}


if __name__ == "__main__":
    # Example AtomicDataDict-style input.
    data = {
        "node_features": jax.random.normal(_k_x, (_N_ATOMS, _HIDDEN),
                                           jnp.float32),
        "node_scale": jax.random.uniform(_k_s, (_N_ATOMS, 1), jnp.float32,
                                         minval=0.5, maxval=1.5),
        "unused_field": jnp.zeros((3,), jnp.float32),  # ignored by the wrapper
    }

    wrapper = DictInputOutputWrapper(
        model=mlp_energy_model,
        input_keys=["node_features", "node_scale"],
        output_keys=["atomic_energy", "total_energy"],
    )

    out = wrapper(data)
    jax.block_until_ready(out["atomic_energy"])
    jax.block_until_ready(out["total_energy"])

    # Sanity check against a plain-JAX reference that uses the same bf16 inputs
    # / f32 accumulation for layer 1 and exact f32 elementwise math for layer 2
    # (mirrors the kernel's numerics; the bf16 boundary cast makes an exact-f32
    # comparison at 1e-4 no longer meaningful).
    x = data["node_features"]
    s = data["node_scale"]
    xb = x.astype(jnp.bfloat16)
    w1b = _PARAMS["w1"].astype(jnp.bfloat16)
    ref_h = jnp.maximum(
        jnp.dot(xb, w1b, preferred_element_type=jnp.float32) + _PARAMS["b1"], 0.0)
    ref_atomic = (jnp.sum(ref_h * _PARAMS["w2"].T, axis=-1, keepdims=True)
                  + _PARAMS["b2"]) * s
    ref_total = jnp.sum(ref_atomic, dtype=jnp.float32).reshape(1, 1)

    assert out["atomic_energy"].shape == (_N_ATOMS, 1)
    assert out["total_energy"].shape == (1, 1)
    assert jnp.allclose(out["atomic_energy"], ref_atomic, atol=1e-3, rtol=1e-3)
    assert jnp.allclose(out["total_energy"], ref_total, atol=1e-2, rtol=1e-3)

    print("KERNEL_OK")
</pallas_src>

<mosaic_0001>
module attributes {stable_mosaic.version = 11 : i64} {
  func.func @_mlp_energy_kernel(%arg0: i32, %arg1: memref<256x32xbf16, #tpu.memory_space<vmem>>, %arg2: memref<1x256xf32, #tpu.memory_space<vmem>>, %arg3: memref<64x32xbf16, #tpu.memory_space<vmem>>, %arg4: memref<64x1xf32, #tpu.memory_space<vmem>>, %arg5: memref<64x1xf32, #tpu.memory_space<vmem>>, %arg6: memref<1x1xf32, #tpu.memory_space<smem>>, %arg7: memref<1x256xf32, #tpu.memory_space<vmem>>) attributes {dimension_semantics = [#tpu.dimension_semantics<parallel>], iteration_bounds = array<i64: 1>, scalar_prefetch = 0 : i64, scratch_operands = 0 : i64, tpu.core_type = #tpu.core_type<tc>, window_params = [{transform_indices = @transform_0, window_bounds = array<i64: 256, 32>}, {transform_indices = @transform_1, window_bounds = array<i64: 1, 256>}, {pipeline_mode = #tpu.pipeline_mode<synchronous>, transform_indices = @transform_2, window_bounds = array<i64: 64, 32>}, {pipeline_mode = #tpu.pipeline_mode<synchronous>, transform_indices = @transform_3, window_bounds = array<i64: 64, 1>}, {pipeline_mode = #tpu.pipeline_mode<synchronous>, transform_indices = @transform_4, window_bounds = array<i64: 64, 1>}, {transform_indices = @transform_5, window_bounds = array<i64: 1, 1>}, {transform_indices = @transform_6, window_bounds = array<i64: 1, 256>}]} {
    %c0 = arith.constant 0 : index
    %c0_0 = arith.constant 0 : index
    %0 = vector.load %arg3[%c0, %c0_0] : memref<64x32xbf16, #tpu.memory_space<vmem>>, vector<64x32xbf16>
    %c0_1 = arith.constant 0 : index
    %c0_2 = arith.constant 0 : index
    %1 = vector.load %arg1[%c0_1, %c0_2] : memref<256x32xbf16, #tpu.memory_space<vmem>>, vector<256x32xbf16>
    %cst = arith.constant dense<0.000000e+00> : vector<64x256xf32>
    %2 = tpu.matmul %0, %1, %cst {dimension_numbers = #tpu.dot_dimension_numbers<[1], [1], [0], [0], [0, 0, 1, 0], [], []>} : vector<64x32xbf16>, vector<256x32xbf16>, vector<64x256xf32> -> vector<64x256xf32>
    %c0_3 = arith.constant 0 : index
    %c0_4 = arith.constant 0 : index
    %3 = vector.load %arg4[%c0_3, %c0_4] : memref<64x1xf32, #tpu.memory_space<vmem>>, vector<64x1xf32>
    %4 = vector.broadcast %3 : vector<64x1xf32> to vector<64x256xf32>
    %5 = arith.addf %2, %4 : vector<64x256xf32>
    %cst_5 = arith.constant 0.000000e+00 : f32
    %6 = vector.broadcast %cst_5 : f32 to vector<64x256xf32>
    %7 = arith.maximumf %5, %6 : vector<64x256xf32>
    %c0_6 = arith.constant 0 : index
    %c0_7 = arith.constant 0 : index
    %8 = vector.load %arg5[%c0_6, %c0_7] : memref<64x1xf32, #tpu.memory_space<vmem>>, vector<64x1xf32>
    %9 = vector.broadcast %8 : vector<64x1xf32> to vector<64x256xf32>
    %10 = arith.mulf %7, %9 : vector<64x256xf32>
    %cst_8 = arith.constant dense<0.000000e+00> : vector<256xf32>
    %11 = vector.multi_reduction <add>, %10, %cst_8 [0] : vector<64x256xf32> to vector<256xf32>
    %12 = vector.shape_cast %11 : vector<256xf32> to vector<1x256xf32>
    %c0_9 = arith.constant 0 : index
    %c0_10 = arith.constant 0 : index
    %13 = memref.load %arg6[%c0_9, %c0_10] : memref<1x1xf32, #tpu.memory_space<smem>>
    %14 = vector.broadcast %13 : f32 to vector<1x256xf32>
    %15 = arith.addf %12, %14 : vector<1x256xf32>
    %c0_11 = arith.constant 0 : index
    %c0_12 = arith.constant 0 : index
    %16 = vector.load %arg2[%c0_11, %c0_12] : memref<1x256xf32, #tpu.memory_space<vmem>>, vector<1x256xf32>
    %17 = arith.mulf %15, %16 : vector<1x256xf32>
    %c0_13 = arith.constant 0 : index
    %c0_14 = arith.constant 0 : index
    %18 = vector.load %arg7[%c0_13, %c0_14] : memref<1x256xf32, #tpu.memory_space<vmem>>, vector<1x256xf32>
    tpu.vector_store %arg7[%c0_13, %c0_14], %17 {strides = array<i32>} : memref<1x256xf32, #tpu.memory_space<vmem>>, vector<1x256xf32>,
    return
  }
  func.func @transform_0(%arg0: i32) -> (i32, i32) {
    %c0_i32 = arith.constant 0 : i32
    %c0_i32_0 = arith.constant 0 : i32
    return %arg0, %c0_i32 : i32, i32
  }
  func.func @transform_1(%arg0: i32) -> (i32, i32) {
    %c0_i32 = arith.constant 0 : i32
    %c0_i32_0 = arith.constant 0 : i32
    return %c0_i32, %arg0 : i32, i32
  }
  func.func @transform_2(%arg0: i32) -> (i32, i32) {
    %c0_i32 = arith.constant 0 : i32
    %c0_i32_0 = arith.constant 0 : i32
    %c0_i32_1 = arith.constant 0 : i32
    return %c0_i32, %c0_i32_0 : i32, i32
  }
  func.func @transform_3(%arg0: i32) -> (i32, i32) {
    %c0_i32 = arith.constant 0 : i32
    %c0_i32_0 = arith.constant 0 : i32
    %c0_i32_1 = arith.constant 0 : i32
    return %c0_i32, %c0_i32_0 : i32, i32
  }
  func.func @transform_4(%arg0: i32) -> (i32, i32) {
    %c0_i32 = arith.constant 0 : i32
    %c0_i32_0 = arith.constant 0 : i32
    %c0_i32_1 = arith.constant 0 : i32
    return %c0_i32, %c0_i32_0 : i32, i32
  }
  func.func @transform_5(%arg0: i32) -> (i32, i32) {
    %c0_i32 = arith.constant 0 : i32
    %c0_i32_0 = arith.constant 0 : i32
    %c0_i32_1 = arith.constant 0 : i32
    return %c0_i32, %c0_i32_0 : i32, i32
  }
  func.func @transform_6(%arg0: i32) -> (i32, i32) {
    %c0_i32 = arith.constant 0 : i32
    %c0_i32_0 = arith.constant 0 : i32
    return %c0_i32, %arg0 : i32, i32
  }
}

</mosaic_0001>

<llo_original>
// kernel: tpu_custom_call.1
$region0: #{tpu_custom_call.1}
  #allocation0 [shape = 'u32[]', space=smem, size = 0x4, offset = 0x4, fixed_abs, tag = 'smem constant byte address 0x4 - core index']
  #allocation1 [shape = 'u32[144,128]{1,0:T(1,128)}', space=vmem, size = 0x12000, scoped, tag = 'internal scratch']
  #allocation2 [shape = 'f32[1,1]{1,0:T(1,128)S(6)}', space=smem, size = 0x200, scoped, tag = 'scoped memory for tpu_custom_call.1']
  %s0 = inlined_call_operand.vmem [shape: bf16[256,32], index: 0, kind: input, shape index: {}]
  %s1 = inlined_call_operand.vmem [shape: f32[1,256], index: 1, kind: input, shape index: {}]
  %s2 = inlined_call_operand.vmem [shape: bf16[64,32], index: 2, kind: input, shape index: {}]
  %s3 = inlined_call_operand.vmem [shape: f32[64,1], index: 3, kind: input, shape index: {}]
  %s4 = inlined_call_operand.vmem [shape: f32[64,1], index: 4, kind: input, shape index: {}]
  %s5 = inlined_call_operand.<no memory space> [shape: f32[1,1], index: 5, kind: input, shape index: {}]
  %s6 = inlined_call_operand.hbm [shape: f32[1,256], index: 6, kind: output, shape index: {}]
  %s7 = sld [smem:[#allocation0]]
  $region34: #{tpu_custom_call.1} parent=0
    _
  %s9 = ssub.s32 1, %s7
  %s10 = scalar_select 0, %s9, %s7
  %11 = sst [smem:[#allocation2]] %s5
  $region1: #{tpu_custom_call.1} parent=0
    #allocation3 [shape = 'u8[1024]{0}', space=vmem, size = 0x400, scoped, tag = 'output window, operand 0, single buffered']
    #allocation4 [shape = 's32[1]{0}', space=sflag, size = 0x4, scoped, tag = 'scoped memory for tpu_custom_call.1']
    %12 = vsyncpa [#allocation4], 0
    // Predicated region
    $region2: #{tpu_custom_call.1} parent=1 // pred_check
      _
    $region3: #{tpu_custom_call.1} parent=1 // pred_check_branch
      %14 = sbr.rel (0) target = $region5
    $region4: #{tpu_custom_call.1} parent=1 // pred_region
      _
    $region5: #{tpu_custom_call.1} parent=1 // pred_fallthru
      _
    // Predicated region
    $region6: #{tpu_custom_call.1} parent=1 // pred_check
      _
    $region7: #{tpu_custom_call.1} parent=1 // pred_check_branch
      %16 = sbr.rel (0) target = $region9
    $region8: #{tpu_custom_call.1} parent=1 // pred_region
      _
    $region9: #{tpu_custom_call.1} parent=1 // pred_fallthru
      _
    // Predicated region
    $region10: #{tpu_custom_call.1} parent=1 // pred_check
      _
    $region11: #{tpu_custom_call.1} parent=1 // pred_check_branch
      %18 = sbr.rel (0) target = $region13
    $region12: #{tpu_custom_call.1} parent=1 // pred_region
      _
    $region13: #{tpu_custom_call.1} parent=1 // pred_fallthru
      _
    // Predicated region
    $region14: #{tpu_custom_call.1} parent=1 // pred_check
      _
    $region15: #{tpu_custom_call.1} parent=1 // pred_check_branch
      %20 = sbr.rel (0) target = $region17
    $region16: #{tpu_custom_call.1} parent=1 // pred_region
      _
    $region17: #{tpu_custom_call.1} parent=1 // pred_fallthru
      _
    // Predicated region
    $region18: #{tpu_custom_call.1} parent=1 // pred_check
      _
    $region19: #{tpu_custom_call.1} parent=1 // pred_check_branch
      %22 = sbr.rel (0) target = $region21
    $region20: #{tpu_custom_call.1} parent=1 // pred_region
      _
    $region21: #{tpu_custom_call.1} parent=1 // pred_fallthru
      _
    // Predicated region
    $region22: #{tpu_custom_call.1} parent=1 // pred_check
      _
    $region23: #{tpu_custom_call.1} parent=1 // pred_check_branch
      %24 = sbr.rel (0) target = $region25
    $region24: #{tpu_custom_call.1} parent=1 // pred_region
      _
    $region25: #{tpu_custom_call.1} parent=1 // pred_fallthru
      _
    %v26 = vld [vmem:[%s2] sm:$0xf]
    %v27 = vld [vmem:[%s2 + $0x4] sm:$0xf]
    %v28 = vld [vmem:[%s2 + $0x8] sm:$0xf]
    %v29 = vld [vmem:[%s2 + $0xc] sm:$0xf]
    %v30 = vld [vmem:[%s2 + $0x10] sm:$0xf]
    %v31 = vld [vmem:[%s2 + $0x14] sm:$0xf]
    %v32 = vld [vmem:[%s2 + $0x18] sm:$0xf]
    %v33 = vld [vmem:[%s2 + $0x1c] sm:$0xf]
    %v34 = vld [vmem:[%s0] sm:$0xf]
    %v35 = vld [vmem:[%s0 + $0x4] sm:$0xf]
    %v36 = vld [vmem:[%s0 + $0x8] sm:$0xf]
    %v37 = vld [vmem:[%s0 + $0xc] sm:$0xf]
    %v38 = vld [vmem:[%s0 + $0x10] sm:$0xf]
    %v39 = vld [vmem:[%s0 + $0x14] sm:$0xf]
    %v40 = vld [vmem:[%s0 + $0x18] sm:$0xf]
    %v41 = vld [vmem:[%s0 + $0x1c] sm:$0xf]
    %v42 = vld [vmem:[%s0 + $0x20] sm:$0xf]
    %v43 = vld [vmem:[%s0 + $0x24] sm:$0xf]
    %v44 = vld [vmem:[%s0 + $0x28] sm:$0xf]
    %v45 = vld [vmem:[%s0 + $0x2c] sm:$0xf]
    %v46 = vld [vmem:[%s0 + $0x30] sm:$0xf]
    %v47 = vld [vmem:[%s0 + $0x34] sm:$0xf]
    %v48 = vld [vmem:[%s0 + $0x38] sm:$0xf]
    %v49 = vld [vmem:[%s0 + $0x3c] sm:$0xf]
    %v50 = vld [vmem:[%s0 + $0x40] sm:$0xf]
    %v51 = vld [vmem:[%s0 + $0x44] sm:$0xf]
    %v52 = vld [vmem:[%s0 + $0x48] sm:$0xf]
    %v53 = vld [vmem:[%s0 + $0x4c] sm:$0xf]
    %v54 = vld [vmem:[%s0 + $0x50] sm:$0xf]
    %v55 = vld [vmem:[%s0 + $0x54] sm:$0xf]
    %v56 = vld [vmem:[%s0 + $0x58] sm:$0xf]
    %v57 = vld [vmem:[%s0 + $0x5c] sm:$0xf]
    %v58 = vld [vmem:[%s0 + $0x60] sm:$0xf]
    %v59 = vld [vmem:[%s0 + $0x64] sm:$0xf]
    %v60 = vld [vmem:[%s0 + $0x68] sm:$0xf]
    %v61 = vld [vmem:[%s0 + $0x6c] sm:$0xf]
    %v62 = vld [vmem:[%s0 + $0x70] sm:$0xf]
    %v63 = vld [vmem:[%s0 + $0x74] sm:$0xf]
    %v64 = vld [vmem:[%s0 + $0x78] sm:$0xf]
    %v65 = vld [vmem:[%s0 + $0x7c] sm:$0xf]
    %v66 = vld [vmem:[%s3] sm:$0xff]
    %v67 = vld [vmem:[%s3 + $0x8] sm:$0xff]
    %v68 = vld [vmem:[%s3 + $0x10] sm:$0xff]
    %v69 = vld [vmem:[%s3 + $0x18] sm:$0xff]
    %v70 = vld [vmem:[%s3 + $0x20] sm:$0xff]
    %v71 = vld [vmem:[%s3 + $0x28] sm:$0xff]
    %v72 = vld [vmem:[%s3 + $0x30] sm:$0xff]
    %v73 = vld [vmem:[%s3 + $0x38] sm:$0xff]
    %75 = vset.pattern.permute.xlu0 0
    %76 = vperm.xlu0 %75, %v66
    %v77 = vpop.permute.xlu0 %76
    %80 = vset.pattern.permute.xlu0 0
    %81 = vperm.xlu0 %80, %v67
    %v82 = vpop.permute.xlu0 %81
    %85 = vset.pattern.permute.xlu0 0
    %86 = vperm.xlu0 %85, %v68
    %v87 = vpop.permute.xlu0 %86
    %90 = vset.pattern.permute.xlu0 0
    %91 = vperm.xlu0 %90, %v69
    %v92 = vpop.permute.xlu0 %91
    %95 = vset.pattern.permute.xlu0 0
    %96 = vperm.xlu0 %95, %v70
    %v97 = vpop.permute.xlu0 %96
    %100 = vset.pattern.permute.xlu0 0
    %101 = vperm.xlu0 %100, %v71
    %v102 = vpop.permute.xlu0 %101
    %105 = vset.pattern.permute.xlu0 0
    %106 = vperm.xlu0 %105, %v72
    %v107 = vpop.permute.xlu0 %106
    %110 = vset.pattern.permute.xlu0 0
    %111 = vperm.xlu0 %110, %v73
    %v112 = vpop.permute.xlu0 %111
    %v122 = vunpack.c.l.b16 %v26
    %v123 = vunpack.c.l.b16 %v27
    %v124 = vunpack.c.l.b16 %v28
    %v125 = vunpack.c.l.b16 %v29
    %v126 = vunpack.c.l.b16 %v30
    %v127 = vunpack.c.l.b16 %v31
    %v128 = vunpack.c.l.b16 %v32
    %v129 = vunpack.c.l.b16 %v33
    %v130 = vpack.c.b16 %v123, %v122
    %v131 = vpack.c.b16 %v125, %v124
    %v132 = vpack.c.b16 %v127, %v126
    %v133 = vpack.c.b16 %v129, %v128
    %v166 = vunpack.c.l.b16 %v34
    %v167 = vunpack.c.l.b16 %v35
    %v168 = vunpack.c.l.b16 %v36
    %v169 = vunpack.c.l.b16 %v37
    %v170 = vunpack.c.l.b16 %v38
    %v171 = vunpack.c.l.b16 %v39
    %v172 = vunpack.c.l.b16 %v40
    %v173 = vunpack.c.l.b16 %v41
    %v174 = vunpack.c.l.b16 %v42
    %v175 = vunpack.c.l.b16 %v43
    %v176 = vunpack.c.l.b16 %v44
    %v177 = vunpack.c.l.b16 %v45
    %v178 = vunpack.c.l.b16 %v46
    %v179 = vunpack.c.l.b16 %v47
    %v180 = vunpack.c.l.b16 %v48
    %v181 = vunpack.c.l.b16 %v49
    %v182 = vunpack.c.l.b16 %v50
    %v183 = vunpack.c.l.b16 %v51
    %v184 = vunpack.c.l.b16 %v52
    %v185 = vunpack.c.l.b16 %v53
    %v186 = vunpack.c.l.b16 %v54
    %v187 = vunpack.c.l.b16 %v55
    %v188 = vunpack.c.l.b16 %v56
    %v189 = vunpack.c.l.b16 %v57
    %v190 = vunpack.c.l.b16 %v58
    %v191 = vunpack.c.l.b16 %v59
    %v192 = vunpack.c.l.b16 %v60
    %v193 = vunpack.c.l.b16 %v61
    %v194 = vunpack.c.l.b16 %v62
    %v195 = vunpack.c.l.b16 %v63
    %v196 = vunpack.c.l.b16 %v64
    %v197 = vunpack.c.l.b16 %v65
    %v198 = vpack.c.b16 %v167, %v166
    %v199 = vpack.c.b16 %v169, %v168
    %v200 = vpack.c.b16 %v171, %v170
    %v201 = vpack.c.b16 %v173, %v172
    %v202 = vpack.c.b16 %v175, %v174
    %v203 = vpack.c.b16 %v177, %v176
    %v204 = vpack.c.b16 %v179, %v178
    %v205 = vpack.c.b16 %v181, %v180
    %v206 = vpack.c.b16 %v183, %v182
    %v207 = vpack.c.b16 %v185, %v184
    %v208 = vpack.c.b16 %v187, %v186
    %v209 = vpack.c.b16 %v189, %v188
    %v210 = vpack.c.b16 %v191, %v190
    %v211 = vpack.c.b16 %v193, %v192
    %v212 = vpack.c.b16 %v195, %v194
    %v213 = vpack.c.b16 %v197, %v196
    %vm214 = vcmask 261120
    %v216 = vsel %vm214, %v130, 0
    %v219 = vsel %vm214, %v131, 0
    %v222 = vsel %vm214, %v132, 0
    %v225 = vsel %vm214, %v133, 0
    %v228 = vsel %vm214, %v198, 0
    %v231 = vsel %vm214, %v199, 0
    %v234 = vsel %vm214, %v200, 0
    %v237 = vsel %vm214, %v201, 0
    %v240 = vsel %vm214, %v202, 0
    %v243 = vsel %vm214, %v203, 0
    %v246 = vsel %vm214, %v204, 0
    %v249 = vsel %vm214, %v205, 0
    %v252 = vsel %vm214, %v206, 0
    %v255 = vsel %vm214, %v207, 0
    %v258 = vsel %vm214, %v208, 0
    %v261 = vsel %vm214, %v209, 0
    %v264 = vsel %vm214, %v210, 0
    %v267 = vsel %vm214, %v211, 0
    %v270 = vsel %vm214, %v212, 0
    %v273 = vsel %vm214, %v213, 0
    %275 = vmatprep.subr.bf16.mxu0 0
    %276 = vmatpush1.bf16.xpose.msra.mxu0 %v228
    %277 = vmatprep.subr.bf16.mxu0 0
    %278 = vmatpush1.bf16.xpose.msra.mxu0 %v231
    %279 = vmatprep.subr.bf16.mxu0 0
    %280 = vmatpush1.bf16.xpose.msra.mxu0 %v234
    %281 = vmatprep.subr.bf16.mxu0 0
    %282 = vmatpush1.bf16.xpose.msra.mxu0 %v237
    %283 = vmatprep.subr.bf16.mxu0 0
    %284 = vmatpush1.bf16.xpose.msra.mxu0 %v240
    %285 = vmatprep.subr.bf16.mxu0 0
    %286 = vmatpush1.bf16.xpose.msra.mxu0 %v243
    %287 = vmatprep.subr.bf16.mxu0 0
    %288 = vmatpush1.bf16.xpose.msra.mxu0 %v246
    %289 = vmatprep.subr.bf16.mxu0 0
    %290 = vmatpush1.bf16.xpose.msra.mxu0 %v249
    %291 = vmatprep.subr.bf16.mxu0 0
    %292 = vmatpush1.bf16.xpose.msra.mxu0 %v252
    %293 = vmatprep.subr.bf16.mxu0 0
    %294 = vmatpush1.bf16.xpose.msra.mxu0 %v255
    %295 = vmatprep.subr.bf16.mxu0 0
    %296 = vmatpush1.bf16.xpose.msra.mxu0 %v258
    %297 = vmatprep.subr.bf16.mxu0 0
    %298 = vmatpush1.bf16.xpose.msra.mxu0 %v261
    %299 = vmatprep.subr.bf16.mxu0 0
    %300 = vmatpush1.bf16.xpose.msra.mxu0 %v264
    %301 = vmatprep.subr.bf16.mxu0 0
    %302 = vmatpush1.bf16.xpose.msra.mxu0 %v267
    %303 = vmatprep.subr.bf16.mxu0 0
    %304 = vmatpush1.bf16.xpose.msra.mxu0 %v270
    %305 = vmatprep.subr.bf16.mxu0 0
    %306 = vmatpush1.bf16.xpose.msra.mxu0 %v273
    %307 = vmatprep.mubr.bf16.mxu0 0
    %308 = vmatmul.mubr.bf16.gmra.mrb[0].mxu0 %v216
    %v309 = vpop.f32.mrb[0].mxu0
    %v310 = vadd.f32 %v77, %v309
    %v311 = vpop.f32.mrb[0].mxu0
    %v312 = vadd.f32 %v77, %v311
    %v313 = vpop.f32.mrb[0].mxu0
    %v314 = vadd.f32 %v82, %v313
    %v315 = vpop.f32.mrb[0].mxu0
    %v316 = vadd.f32 %v82, %v315
    %317 = vmatprep.mubr.bf16.mxu0 0
    %318 = vmatmul.mubr.bf16.gmra.mrb[0].mxu0 %v219
    %v319 = vpop.f32.mrb[0].mxu0
    %v320 = vadd.f32 %v87, %v319
    %v321 = vpop.f32.mrb[0].mxu0
    %v322 = vadd.f32 %v87, %v321
    %v323 = vpop.f32.mrb[0].mxu0
    %v324 = vadd.f32 %v92, %v323
    %v325 = vpop.f32.mrb[0].mxu0
    %v326 = vadd.f32 %v92, %v325
    %327 = vmatprep.mubr.bf16.mxu0 0
    %328 = vmatmul.mubr.bf16.gmra.mrb[0].mxu0 %v222
    %v329 = vpop.f32.mrb[0].mxu0
    %v330 = vadd.f32 %v97, %v329
    %v331 = vpop.f32.mrb[0].mxu0
    %v332 = vadd.f32 %v97, %v331
    %v333 = vpop.f32.mrb[0].mxu0
    %v334 = vadd.f32 %v102, %v333
    %v335 = vpop.f32.mrb[0].mxu0
    %v336 = vadd.f32 %v102, %v335
    %337 = vmatprep.mubr.bf16.mxu0 0
    %338 = vmatmul.mubr.bf16.gmra.mrb[0].mxu0 %v225
    %v339 = vpop.f32.mrb[0].mxu0
    %v340 = vadd.f32 %v107, %v339
    %v341 = vpop.f32.mrb[0].mxu0
    %v342 = vadd.f32 %v107, %v341
    %v343 = vpop.f32.mrb[0].mxu0
    %v344 = vadd.f32 %v112, %v343
    %v345 = vpop.f32.mrb[0].mxu0
    %v346 = vadd.f32 %v112, %v345
    %347 = vdwg.mxu0
    %v348 = vmax.f32 %v310, 0.0
    %v349 = vmax.f32 %v312, 0.0
    %v350 = vmax.f32 %v314, 0.0
    %v351 = vmax.f32 %v316, 0.0
    %v352 = vmax.f32 %v320, 0.0
    %v353 = vmax.f32 %v322, 0.0
    %v354 = vmax.f32 %v324, 0.0
    %v355 = vmax.f32 %v326, 0.0
    %v356 = vmax.f32 %v330, 0.0
    %v357 = vmax.f32 %v332, 0.0
    %v358 = vmax.f32 %v334, 0.0
    %v359 = vmax.f32 %v336, 0.0
    %v360 = vmax.f32 %v340, 0.0
    %v361 = vmax.f32 %v342, 0.0
    %v362 = vmax.f32 %v344, 0.0
    %v363 = vmax.f32 %v346, 0.0
    %v364 = vld [vmem:[%s4] sm:$0xff]
    %v365 = vld [vmem:[%s4 + $0x8] sm:$0xff]
    %v366 = vld [vmem:[%s4 + $0x10] sm:$0xff]
    %v367 = vld [vmem:[%s4 + $0x18] sm:$0xff]
    %v368 = vld [vmem:[%s4 + $0x20] sm:$0xff]
    %v369 = vld [vmem:[%s4 + $0x28] sm:$0xff]
    %v370 = vld [vmem:[%s4 + $0x30] sm:$0xff]
    %v371 = vld [vmem:[%s4 + $0x38] sm:$0xff]
    %373 = vset.pattern.permute.xlu0 0
    %374 = vperm.xlu0 %373, %v364
    %v375 = vpop.permute.xlu0 %374
    %378 = vset.pattern.permute.xlu0 0
    %379 = vperm.xlu0 %378, %v365
    %v380 = vpop.permute.xlu0 %379
    %383 = vset.pattern.permute.xlu0 0
    %384 = vperm.xlu0 %383, %v366
    %v385 = vpop.permute.xlu0 %384
    %388 = vset.pattern.permute.xlu0 0
    %389 = vperm.xlu0 %388, %v367
    %v390 = vpop.permute.xlu0 %389
    %393 = vset.pattern.permute.xlu0 0
    %394 = vperm.xlu0 %393, %v368
    %v395 = vpop.permute.xlu0 %394
    %398 = vset.pattern.permute.xlu0 0
    %399 = vperm.xlu0 %398, %v369
    %v400 = vpop.permute.xlu0 %399
    %403 = vset.pattern.permute.xlu0 0
    %404 = vperm.xlu0 %403, %v370
    %v405 = vpop.permute.xlu0 %404
    %408 = vset.pattern.permute.xlu0 0
    %409 = vperm.xlu0 %408, %v371
    %v410 = vpop.permute.xlu0 %409
    %v412 = vmul.f32 %v348, %v375
    %v413 = vmul.f32 %v349, %v375
    %v414 = vmul.f32 %v350, %v380
    %v415 = vmul.f32 %v351, %v380
    %v416 = vmul.f32 %v352, %v385
    %v417 = vmul.f32 %v353, %v385
    %v418 = vmul.f32 %v354, %v390
    %v419 = vmul.f32 %v355, %v390
    %v420 = vmul.f32 %v356, %v395
    %v421 = vmul.f32 %v357, %v395
    %v422 = vmul.f32 %v358, %v400
    %v423 = vmul.f32 %v359, %v400
    %v424 = vmul.f32 %v360, %v405
    %v425 = vmul.f32 %v361, %v405
    %v426 = vmul.f32 %v362, %v410
    %v427 = vmul.f32 %v363, %v410
    %v428 = vadd.f32 %v412, %v414
    %v429 = vadd.f32 %v428, %v416
    %v430 = vadd.f32 %v429, %v418
    %v431 = vadd.f32 %v430, %v420
    %v432 = vadd.f32 %v431, %v422
    %v433 = vadd.f32 %v432, %v424
    %v434 = vadd.f32 %v433, %v426
    %v435 = vrot.slane %v434, 4
    %v436 = vadd.f32 %v434, %v435
    %v437 = vrot.slane %v436, 2
    %v438 = vadd.f32 %v436, %v437
    %v439 = vrot.slane %v438, 1
    %v440 = vadd.f32 %v438, %v439
    %v441 = vadd.f32 %v413, %v415
    %v442 = vadd.f32 %v441, %v417
    %v443 = vadd.f32 %v442, %v419
    %v444 = vadd.f32 %v443, %v421
    %v445 = vadd.f32 %v444, %v423
    %v446 = vadd.f32 %v445, %v425
    %v447 = vadd.f32 %v446, %v427
    %v448 = vrot.slane %v447, 4
    %v449 = vadd.f32 %v447, %v448
    %v450 = vrot.slane %v449, 2
    %v451 = vadd.f32 %v449, %v450
    %v452 = vrot.slane %v451, 1
    %v453 = vadd.f32 %v451, %v452
    %s454 = sld [smem:[#allocation2]]
    %v455 = vstv %s454
    %v456 = vadd.f32 %v440, %v455
    %v457 = vadd.f32 %v453, %v455
    %v458 = vld [vmem:[%s1] sm:$0x3]
    %v460 = vlaneseq
    %v461 = vshrl.u32 %v460, 7
    %v462 = vsub.s32 0, %v461
    %v463 = vrot.slane %v458, %v462
    %v464 = vlaneseq
    %v465 = vshrl.u32 %v464, 7
    %v466 = vsub.s32 1, %v465
    %v467 = vrot.slane %v458, %v466
    %v470 = vmul.f32 %v456, %v463
    %v471 = vmul.f32 %v457, %v467
    %v474 = vcombine.low %v470, %v471
    %v476 = vunpack.c.l.s4 1966171168
    %v477 = vunpack.c.0.s8 %v476
    %v478 = vlaneseq
    %v479 = vshrl.u32 %v478, 7
    %v480 = vsub.s32 %v477, %v479
    %v481 = vrot.slane %v474, %v480
    %v483 = vunpack.c.l.s4 1966171168
    %v484 = vunpack.c.0.s8 %v483
    %v485 = vlaneseq
    %v486 = vshrl.u32 %v485, 7
    %v487 = vsub.s32 %v484, %v486
    %v488 = vrot.slane %v481, %v487
    %v490 = vlaneseq
    %vm491 = vcmp.ge.s32.totalorder %v490, 0
    %vm492 = vcmp.lt.s32.totalorder %v490, 256
    %vm493 = vmand %vm491, %vm492
    %494 = vst.msk [vmem:[#allocation3] sm:$0x3] %vm493, %v488
    // Predicated region
    $region26: #{tpu_custom_call.1} parent=1 // pred_check
      _
    $region27: #{tpu_custom_call.1} parent=1 // pred_check_branch
      %496 = sbr.rel (0) target = $region29
    $region28: #{tpu_custom_call.1} parent=1 // pred_region
      %s498 = ssub.s32 32, 32
      %499 = vsyncadd [#allocation4], %s498
      %s501 = sshll.u32 [#allocation3], 4
      %s502 = int_to_ptr.vmem [resolvable:$true] %s501
      %504 = dma.vmem_to_hbm [thread:$0]  %s502, 32, %s6, [#allocation4]
    $region29: #{tpu_custom_call.1} parent=1 // pred_fallthru
      _
    // Predicated region
    $region30: #{tpu_custom_call.1} parent=1 // pred_check
      _
    $region31: #{tpu_custom_call.1} parent=1 // pred_check_branch
      %506 = sbr.rel (0) target = $region33
    $region32: #{tpu_custom_call.1} parent=1 // pred_region
      %507 = dma.done [#allocation4], 32
    $region33: #{tpu_custom_call.1} parent=1 // pred_fallthru
      _
    %508 = vsyncpa [#allocation4], 1

</llo_original>
